<compile_context>
chip_gen: v6e
topology: v6e:2x2x1
jax: 0.10.0
libtpu: 0.0.40
codegen_flags: <defaults>
</compile_context>

<pallas_src>
import numpy as np
import jax
import jax.numpy as jnp
from jax.experimental import pallas as pl
from jax.experimental.pallas import tpu as pltpu

MAX_TIME_STEPS = 1000
EMBEDDING_SIZE = 32
N_BASE = 10000.0
TB_ROWS_MAX = 8192  # packed rows per tile (multiple of 8) -> 4 MiB f32 output block


def _round_up(x, m):
    return (x + m - 1) // m * m


def _cdiv(a, b):
    return -(-a // b)


def sinusoidal_embed_kernel(x_ref, sel_ref, out_ref):
    # x_ref   : (tb, K) f32   per packed row: [t_hi per group | t_lo per group | 1 | 0-pad]
    # sel_ref : (K, W)  f32   fused broadcast * inv_denom + phase matrix (resident)
    # out_ref : (tb, W)       W = PACK * E, lane-dense (128 wide for E=32)
    #
    # The MXU matmul simultaneously (a) broadcasts each timestep across its
    # E-lane group, (b) scales by inv_denom, (c) adds the pi/2 phase on odd
    # (cos) columns via the ones column.  cos(x) == sin(x + pi/2), so a single
    # sin covers both halves of the table.
    angle = jnp.dot(x_ref[...], sel_ref[...], preferred_element_type=jnp.float32)
    out_ref[...] = jnp.sin(angle).astype(out_ref.dtype)


def _sinusoid_table_np(max_time_steps, embedding_size, n):
    """Trace-time table for the small-batch fast path (numpy, float64 math)."""
    i = np.arange(embedding_size // 2, dtype=np.float64)
    k = np.arange(max_time_steps, dtype=np.float64)[:, None]
    ang = k / np.float64(n) ** (2.0 * i / embedding_size)
    tab = np.zeros((max_time_steps, embedding_size), np.float64)
    tab[:, 0::2] = np.sin(ang)
    tab[:, 1::2] = np.cos(ang)
    return tab.astype(np.float32)


def sinusoidal_positional_embedding(t,
                                    embedding_size=EMBEDDING_SIZE,
                                    max_time_steps=MAX_TIME_STEPS,
                                    n=N_BASE,
                                    tb_rows=TB_ROWS_MAX,
                                    out_dtype=jnp.float32,
                                    fastpath_max_batch=0):
    """Equivalent of SinusoidalPositionalEmbedding.forward(t).

    fastpath_max_batch: if t.size <= this value, use a plain-JAX gather from a
    trace-time table instead of launching the kernel (recommended ~1024 for
    tiny diffusion-style calls where launch/wrapper overhead dominates).
    Default 0 -> always use the Pallas kernel.
    """
    E = int(embedding_size)
    assert E % 2 == 0, "embedding_size must be even"
    # Two-way bf16-exact split of t (hi/lo) covers max_time_steps up to 2**16.
    assert max_time_steps <= 65536
    orig_shape = t.shape

    # Valid-range clamp (the PyTorch table gather would index-error instead).
    t_flat = jnp.clip(t.reshape(-1).astype(jnp.int32), 0, max_time_steps - 1)
    B = int(t_flat.shape[0])

    def _finalize(emb):
        emb = emb.reshape(orig_shape + (E,))
        if len(orig_shape) > 1:
            # Matches PyTorch's `.squeeze()` quirk (drops every size-1 dim).
            return jnp.squeeze(emb)
        return emb

    # ---- small-batch fast path: plain-JAX gather from a trace-time table ----
    if B <= int(fastpath_max_batch):
        table = jnp.asarray(_sinusoid_table_np(max_time_steps, E, n), dtype=out_dtype)
        return _finalize(table[t_flat])

    # ---------------------------- kernel path --------------------------------
    # Lane-dense packing: PACK timesteps share one 128-lane output row.
    pack = 128 // E if (E <= 128 and 128 % E == 0) else 1
    W = pack * E
    K = _round_up(2 * pack + 1, 8)  # hi+lo column per group + ones column, padded

    # bf16 output tiles want 16-row alignment; f32 wants 8.
    row_align = 8 if np.dtype(out_dtype).itemsize >= 4 else 16
    rows = _cdiv(B, pack)
    # Force >= 2 grid steps whenever rows permit so both v7x TensorCores get
    # work; cap at TB_ROWS_MAX (4 MiB out block + 4 MiB lane-padded in block,
    # double-buffered ~16 MiB -> under the 32 MiB scoped-VMEM default).
    tb = min(int(tb_rows), _round_up(_cdiv(rows, 2), row_align))
    tb = _round_up(max(tb, 1), row_align)
    rows_padded = _round_up(rows, tb)

    t_pad = jnp.pad(t_flat, (0, rows_padded * pack - B))
    t_rows = t_pad.reshape(rows_padded, pack)

    # Split t into bf16-exact hi/lo parts so the fused f32 matmul (emulated via
    # bf16 passes on the MXU) is exact: hi is a multiple of `split` with <= 8
    # significant bits, lo < split <= 256.
    split = 1 << max(0, (max_time_steps - 1).bit_length() - 8)
    t_hi = (t_rows // split) * split
    t_lo = t_rows - t_hi
    ones = jnp.ones((rows_padded, 1), jnp.float32)
    zpad = jnp.zeros((rows_padded, K - 2 * pack - 1), jnp.float32)
    x = jnp.concatenate(
        [t_hi.astype(jnp.float32), t_lo.astype(jnp.float32), ones, zpad], axis=1)

    # ---- trace-time fused constant (float64 -> f32) --------------------------
    # Column c (within a group) gets angle = t * inv_denom[c] + phase[c], with
    # phase = 0 on even (sin) columns and pi/2 on odd (cos) columns.
    pair = np.arange(E // 2, dtype=np.float64)
    inv_denom = np.repeat(np.float64(n) ** (-2.0 * pair / E), 2)   # (E,)
    phase = np.tile(np.array([0.0, np.pi / 2.0]), E // 2)          # (E,)
    sel = np.zeros((K, W), np.float64)
    for g in range(pack):
        cols = slice(g * E, (g + 1) * E)
        sel[g, cols] = inv_denom          # t_hi row of group g
        sel[pack + g, cols] = inv_denom   # t_lo row of group g
    sel[2 * pack, :] = np.tile(phase, pack)  # ones row -> phase for every column
    sel = sel.astype(np.float32)

    grid = (rows_padded // tb,)
    out = pl.pallas_call(
        sinusoidal_embed_kernel,
        out_shape=jax.ShapeDtypeStruct((rows_padded, W), out_dtype),
        grid=grid,
        in_specs=[
            pl.BlockSpec((tb, K), lambda i: (i, 0)),
            pl.BlockSpec((K, W), lambda i: (0, 0)),   # resident fused constant
        ],
        out_specs=pl.BlockSpec((tb, W), lambda i: (i, 0)),
        compiler_params=pltpu.CompilerParams(
            dimension_semantics=("parallel",)),
    )(x, jnp.asarray(sel))

    # (rows_padded, PACK*E) -> (rows_padded*PACK, E) is a pure row-major reshape.
    emb = out.reshape(rows_padded * pack, E)[:B]
    return _finalize(emb)


def _reference_table(max_t, E, n=N_BASE):
    """Pure-JAX f32 mirror of the PyTorch __init__ table construction."""
    i = jnp.arange(E // 2, dtype=jnp.float32)
    k = jnp.arange(max_t, dtype=jnp.float32)[:, None]
    denom = n ** (2.0 * i / E)
    emb = jnp.zeros((max_t, E), jnp.float32)
    emb = emb.at[:, 0::2].set(jnp.sin(k / denom))
    emb = emb.at[:, 1::2].set(jnp.cos(k / denom))
    return emb


if __name__ == "__main__":
    table = _reference_table(MAX_TIME_STEPS, EMBEDDING_SIZE)
    key = jax.random.PRNGKey(0)
    k1, k2, k3 = jax.random.split(key, 3)

    # 1) Typical diffusion call: 1-D batch of 8 timesteps (kernel path).
    B = 8
    t = jax.random.randint(k1, (B,), 0, MAX_TIME_STEPS, dtype=jnp.int32)
    out = jax.block_until_ready(sinusoidal_positional_embedding(t))
    ref = table[t, :]
    assert out.shape == (B, EMBEDDING_SIZE)
    assert jnp.allclose(out, ref, atol=2e-3), float(jnp.max(jnp.abs(out - ref)))

    # 2) >1-D timesteps + multi-tile grid (small tb to exercise pipelining and
    #    the >=2-grid-step / dual-TensorCore path).
    t2 = jax.random.randint(k2, (2, 50), 0, MAX_TIME_STEPS, dtype=jnp.int32)
    out2 = jax.block_until_ready(
        sinusoidal_positional_embedding(t2, tb_rows=8))
    ref2 = jnp.squeeze(table[t2, :])
    assert out2.shape == ref2.shape
    assert jnp.allclose(out2, ref2, atol=2e-3), \
        float(jnp.max(jnp.abs(out2 - ref2)))

    # 3) Optional bfloat16 output (compute stays f32 in-kernel).
    t3 = jax.random.randint(k3, (64,), 0, MAX_TIME_STEPS, dtype=jnp.int32)
    out3 = jax.block_until_ready(
        sinusoidal_positional_embedding(t3, out_dtype=jnp.bfloat16))
    ref3 = table[t3, :]
    assert out3.shape == (64, EMBEDDING_SIZE)
    assert jnp.allclose(out3.astype(jnp.float32), ref3, atol=1e-2), \
        float(jnp.max(jnp.abs(out3.astype(jnp.float32) - ref3)))

    # 4) Small-batch plain-JAX fast path (recommended for B <~ 1024).
    out4 = jax.block_until_ready(
        sinusoidal_positional_embedding(t, fastpath_max_batch=1024))
    assert jnp.allclose(out4, ref, atol=2e-3), \
        float(jnp.max(jnp.abs(out4 - ref)))

    print("KERNEL_OK")
</pallas_src>

<mosaic_0001>
module attributes {stable_mosaic.version = 11 : i64} {
  func.func @sinusoidal_embed_kernel(%arg0: i32, %arg1: memref<8x16xf32, #tpu.memory_space<vmem>>, %arg2: memref<16x128xf32, #tpu.memory_space<vmem>>, %arg3: memref<8x128xf32, #tpu.memory_space<vmem>>) attributes {dimension_semantics = [#tpu.dimension_semantics<parallel>], iteration_bounds = array<i64: 1>, scalar_prefetch = 0 : i64, scratch_operands = 0 : i64, tpu.core_type = #tpu.core_type<tc>, window_params = [{transform_indices = @transform_0, window_bounds = array<i64: 8, 16>}, {pipeline_mode = #tpu.pipeline_mode<synchronous>, transform_indices = @transform_1, window_bounds = array<i64: 16, 128>}, {transform_indices = @transform_2, window_bounds = array<i64: 8, 128>}]} {
    %c0 = arith.constant 0 : index
    %c0_0 = arith.constant 0 : index
    %0 = vector.load %arg1[%c0, %c0_0] : memref<8x16xf32, #tpu.memory_space<vmem>>, vector<8x16xf32>
    %c0_1 = arith.constant 0 : index
    %c0_2 = arith.constant 0 : index
    %1 = vector.load %arg2[%c0_1, %c0_2] : memref<16x128xf32, #tpu.memory_space<vmem>>, vector<16x128xf32>
    %cst = arith.constant dense<0.000000e+00> : vector<8x128xf32>
    %2 = tpu.matmul %0, %1, %cst {dimension_numbers = #tpu.dot_dimension_numbers<[1], [0], [0], [1], [0, 0, 1, 1], [], []>} : vector<8x16xf32>, vector<16x128xf32>, vector<8x128xf32> -> vector<8x128xf32>
    %3 = math.sin %2 : vector<8x128xf32>
    %c0_3 = arith.constant 0 : index
    %c0_4 = arith.constant 0 : index
    %4 = vector.load %arg3[%c0_3, %c0_4] : memref<8x128xf32, #tpu.memory_space<vmem>>, vector<8x128xf32>
    tpu.vector_store %arg3[%c0_3, %c0_4], %3 {strides = array<i32>} : memref<8x128xf32, #tpu.memory_space<vmem>>, vector<8x128xf32>,
    return
  }
  func.func @transform_0(%arg0: i32) -> (i32, i32) {
    %c0_i32 = arith.constant 0 : i32
    %c0_i32_0 = arith.constant 0 : i32
    return %arg0, %c0_i32 : i32, i32
  }
  func.func @transform_1(%arg0: i32) -> (i32, i32) {
    %c0_i32 = arith.constant 0 : i32
    %c0_i32_0 = arith.constant 0 : i32
    %c0_i32_1 = arith.constant 0 : i32
    return %c0_i32, %c0_i32_0 : i32, i32
  }
  func.func @transform_2(%arg0: i32) -> (i32, i32) {
    %c0_i32 = arith.constant 0 : i32
    %c0_i32_0 = arith.constant 0 : i32
    return %arg0, %c0_i32 : i32, i32
  }
}

</mosaic_0001>

<llo_original>
// kernel: tpu_custom_call.1
$region0: #{tpu_custom_call.1}
  #allocation0 [shape = 'u32[]', space=smem, size = 0x4, offset = 0x4, fixed_abs, tag = 'smem constant byte address 0x4 - core index']
  #allocation1 [shape = 'u32[144,128]{1,0:T(1,128)}', space=vmem, size = 0x12000, scoped, tag = 'internal scratch']
  %s0 = inlined_call_operand.hbm [shape: f32[8,16], index: 0, kind: input, shape index: {}]
  %s1 = inlined_call_operand.hbm [shape: f32[16,128], index: 1, kind: input, shape index: {}]
  %s2 = inlined_call_operand.hbm [shape: f32[8,128], index: 2, kind: output, shape index: {}]
  %s3 = sld [smem:[#allocation0]]
  $region26: #{tpu_custom_call.1} parent=0
    _
  %s5 = ssub.s32 1, %s3
  %s6 = scalar_select 0, %s5, %s3
  $region1: #{tpu_custom_call.1} parent=0
    #allocation2 [shape = 'u8[4096]{0}', space=vmem, size = 0x1000, scoped, tag = 'input window, operand 0, single buffered']
    #allocation3 [shape = 's32[1]{0}', space=sflag, size = 0x4, scoped, tag = 'scoped memory for tpu_custom_call.1']
    #allocation4 [shape = 's32[1]{0}', space=sflag, size = 0x4, scoped, tag = 'scoped memory for tpu_custom_call.1']
    #allocation5 [shape = 'u8[8192]{0}', space=vmem, size = 0x2000, scoped, tag = 'input window, operand 1, single buffered']
    #allocation6 [shape = 's32[1]{0}', space=sflag, size = 0x4, scoped, tag = 'scoped memory for tpu_custom_call.1']
    #allocation7 [shape = 'u8[4096]{0}', space=vmem, size = 0x1000, scoped, tag = 'output window, operand 0, single buffered']
    %7 = vsyncpa [#allocation3], 0
    %8 = vsyncpa [#allocation6], 0
    %9 = vsyncpa [#allocation4], 0
    // Predicated region
    $region2: #{tpu_custom_call.1} parent=1 // pred_check
      _
    $region3: #{tpu_custom_call.1} parent=1 // pred_check_branch
      %11 = sbr.rel (0) target = $region5
    $region4: #{tpu_custom_call.1} parent=1 // pred_region
      %s13 = ssub.s32 128, 128
      %14 = vsyncadd [#allocation3], %s13
      %s16 = sshll.u32 [#allocation2], 4
      %s17 = int_to_ptr.vmem [resolvable:$true] %s16
      %19 = dma.hbm_to_vmem [thread:$0]  %s0, 128, %s17, [#allocation3]
    $region5: #{tpu_custom_call.1} parent=1 // pred_fallthru
      _
    // Predicated region
    $region6: #{tpu_custom_call.1} parent=1 // pred_check
      _
    $region7: #{tpu_custom_call.1} parent=1 // pred_check_branch
      %21 = sbr.rel (0) target = $region9
    $region8: #{tpu_custom_call.1} parent=1 // pred_region
      %s23 = ssub.s32 256, 256
      %24 = vsyncadd [#allocation6], %s23
      %s25 = sshll.u32 [#allocation5], 4
      %s26 = int_to_ptr.vmem [resolvable:$true] %s25
      %31 = dma.hbm_to_vmem [thread:$0]  %s1, 256, %s26, [#allocation6], 128, 128, 8
    $region9: #{tpu_custom_call.1} parent=1 // pred_fallthru
      _
    // Predicated region
    $region10: #{tpu_custom_call.1} parent=1 // pred_check
      _
    $region11: #{tpu_custom_call.1} parent=1 // pred_check_branch
      %33 = sbr.rel (0) target = $region13
    $region12: #{tpu_custom_call.1} parent=1 // pred_region
      %34 = dma.done [#allocation3], 128
    $region13: #{tpu_custom_call.1} parent=1 // pred_fallthru
      _
    // Predicated region
    $region14: #{tpu_custom_call.1} parent=1 // pred_check
      _
    $region15: #{tpu_custom_call.1} parent=1 // pred_check_branch
      %36 = sbr.rel (0) target = $region17
    $region16: #{tpu_custom_call.1} parent=1 // pred_region
      %37 = dma.done [#allocation6], 256
    $region17: #{tpu_custom_call.1} parent=1 // pred_fallthru
      _
    %v38 = vld [vmem:[#allocation2] sm:$0xff]
    %v39 = vld [vmem:[#allocation5] sm:$0xff]
    %v40 = vld [vmem:[#allocation5 + $0x8] sm:$0xff]
    %vm41 = vcmask 130048
    %v43 = vsel %vm41, %v38, 0
    %45 = vmatprep.subr.mxu0 0.0
    %46 = vmatpush1.msra.mxu0 0.0
    %47 = vmatprep.subr.mxu0 0.0
    %48 = vmatpush1.msra.mxu0 0.0
    %49 = vmatprep.subr.mxu0 0.0
    %50 = vmatpush1.msra.mxu0 0.0
    %51 = vmatprep.subr.mxu0 0.0
    %52 = vmatpush1.msra.mxu0 0.0
    %53 = vmatprep.subr.mxu0 0.0
    %54 = vmatpush1.msra.mxu0 0.0
    %55 = vmatprep.subr.mxu0 0.0
    %56 = vmatpush1.msra.mxu0 0.0
    %57 = vmatprep.subr.mxu0 0.0
    %58 = vmatpush1.msra.mxu0 0.0
    %59 = vmatprep.subr.mxu0 0.0
    %60 = vmatpush1.msra.mxu0 0.0
    %61 = vmatprep.subr.mxu0 0.0
    %62 = vmatpush1.msra.mxu0 0.0
    %63 = vmatprep.subr.mxu0 0.0
    %64 = vmatpush1.msra.mxu0 0.0
    %65 = vmatprep.subr.mxu0 0.0
    %66 = vmatpush1.msra.mxu0 0.0
    %67 = vmatprep.subr.mxu0 0.0
    %68 = vmatpush1.msra.mxu0 0.0
    %69 = vmatprep.subr.mxu0 0.0
    %70 = vmatpush1.msra.mxu0 0.0
    %71 = vmatprep.subr.mxu0 0.0
    %72 = vmatpush1.msra.mxu0 0.0
    %73 = vmatprep.subr.mxu0 0.0
    %74 = vmatpush1.msra.mxu0 %v40
    %75 = vmatprep.subr.mxu0 0.0
    %76 = vmatpush1.msra.mxu0 %v39
    %77 = vmatprep.subr.mxu0 0.0
    %78 = vmatpush2.msra.mxu0 0.0
    %79 = vmatprep.subr.mxu0 0.0
    %80 = vmatpush2.msra.mxu0 0.0
    %81 = vmatprep.subr.mxu0 0.0
    %82 = vmatpush2.msra.mxu0 0.0
    %83 = vmatprep.subr.mxu0 0.0
    %84 = vmatpush2.msra.mxu0 0.0
    %85 = vmatprep.subr.mxu0 0.0
    %86 = vmatpush2.msra.mxu0 0.0
    %87 = vmatprep.subr.mxu0 0.0
    %88 = vmatpush2.msra.mxu0 0.0
    %89 = vmatprep.subr.mxu0 0.0
    %90 = vmatpush2.msra.mxu0 0.0
    %91 = vmatprep.subr.mxu0 0.0
    %92 = vmatpush2.msra.mxu0 0.0
    %93 = vmatprep.subr.mxu0 0.0
    %94 = vmatpush2.msra.mxu0 0.0
    %95 = vmatprep.subr.mxu0 0.0
    %96 = vmatpush2.msra.mxu0 0.0
    %97 = vmatprep.subr.mxu0 0.0
    %98 = vmatpush2.msra.mxu0 0.0
    %99 = vmatprep.subr.mxu0 0.0
    %100 = vmatpush2.msra.mxu0 0.0
    %101 = vmatprep.subr.mxu0 0.0
    %102 = vmatpush2.msra.mxu0 0.0
    %103 = vmatprep.subr.mxu0 0.0
    %104 = vmatpush2.msra.mxu0 0.0
    %105 = vmatprep.subr.mxu0 0.0
    %106 = vmatpush2.msra.mxu0 0.0
    %107 = vmatprep.subr.mxu0 0.0
    %108 = vmatpush2.msra.mxu0 0.0
    %109 = vmatprep.mubr.f32.mxu0 0.0
    %110 = vmatmul.mubr.f32.gmra.mxu0 %v43
    %v111 = vpop.f32.mrf.mxu0
    %v112 = vadd.f32 0.0, %v111
    %v113 = vpop.f32.mrf.mxu0
    %114 = vdwg.mxu0
    %v115 = vand.u32 2147483647, %v112
    %vm116 = vcmp.le.f32.partialorder %v115, 0.7853982
    %vm117 = vcmp.lt.s32.totalorder %v112, 0
    %v118 = vand.u32 %v112, 2139095040
    %v119 = vshrl.u32 %v118, 23
    %v120 = vsub.s32 %v119, 127
    %v121 = vand.u32 2147483647, %v112
    %v122 = vand.u32 %v121, 8388607
    %v123 = vor.u32 %v122, 8388608
    %v124 = vsub.s32 0, %v123
    %v125 = vadd.s32 %v120, 1
    %vm126 = vcmp.gt.s32.totalorder %v125, 0
    %v127 = vsel %vm126, %v125, 0
    %v128 = vshrl.u32 %v127, 5
    %v129 = vand.u32 %v127, 31
    %v130 = vsub.s32 32, %v129
    %v131 = vshrl.u32 683565275, %v130
    %v132 = vshll.u32 683565275, %v129
    %v133 = vshrl.u32 2475754826, %v130
    %v134 = vor.u32 %v132, %v133
    %v135 = vshll.u32 2475754826, %v129
    %v136 = vshrl.u32 2131351028, %v130
    %v137 = vor.u32 %v135, %v136
    %v138 = vshll.u32 2131351028, %v129
    %v139 = vshrl.u32 2102212464, %v130
    %v140 = vor.u32 %v138, %v139
    %v141 = vshll.u32 2102212464, %v129
    %v142 = vshrl.u32 920167782, %v130
    %v143 = vor.u32 %v141, %v142
    %v144 = vshll.u32 920167782, %v129
    %v145 = vshrl.u32 1326507024, %v130
    %v146 = vor.u32 %v144, %v145
    %vm147 = vcmp.lt.s32.totalorder %v128, 1
    %vm148 = vcmp.lt.s32.totalorder %v128, 2
    %vm149 = vcmp.lt.s32.totalorder %v128, 3
    %vm150 = vcmp.lt.s32.totalorder %v128, 4
    %v151 = vsel %vm147, %v131, %v134
    %v152 = vsel %vm150, %v140, 2102212464
    %v153 = vsel %vm149, %v137, %v152
    %v154 = vsel %vm148, %v151, %v153
    %v155 = vsel %vm147, %v134, %v137
    %v156 = vsel %vm150, %v143, 920167782
    %v157 = vsel %vm149, %v140, %v156
    %v158 = vsel %vm148, %v155, %v157
    %v159 = vsel %vm147, %v137, %v140
    %v160 = vsel %vm150, %v146, 1326507024
    %v161 = vsel %vm149, %v143, %v160
    %v162 = vsel %vm148, %v159, %v161
    %v163 = vshll.u32 %v123, 8
    %v164 = vmul.u32.u64.compose %v163, %v162
    %v165 = vextract.low.u32 %v164
    %v166 = vextract.high.u32 %v164
    %v167 = vmul.u32.u64.compose %v163, %v158
    %v168 = vextract.low.u32 %v167
    %v169 = vextract.high.u32 %v167
    %v170 = vmul.u32 %v163, %v154
    %v171 = vadd.s32 %v166, %v168
    %vm172 = vc.u32 %v166, %v168
    %v173 = vadd.s32 %v169, 1
    %v174 = vsel %vm172, %v173, %v169
    %v175 = vadd.s32 %v170, %v174
    %v176 = vadd.s32 %v175, 536870912
    %v177 = vshrl.u32 %v176, 30
    %v178 = vshll.u32 %v177, 30
    %v179 = vsub.s32 %v175, %v178
    %vm180 = vcmp.lt.s32.totalorder %v179, 0
    %v181 = vsub.s32 0, %v179
    %v182 = vsel %vm180, %v181, %v179
    %v183 = vclz %v182
    %v184 = vsub.s32 %v183, 2
    %vm185 = vcmp.gt.s32.totalorder 0, %v184
    %v186 = vsel %vm185, 0, %v184
    %v187 = vsub.s32 32, %v186
    %v188 = vshll.u32 %v179, %v186
    %v189 = vshrl.u32 %v171, %v187
    %v190 = vor.u32 %v188, %v189
    %v191 = vsub.s32 4294967266, %v186
    %v192 = vadd.s32 %v191, 127
    %v193 = vshll.u32 %v192, 23
    %v194 = vor.u32 4788187, %v193
    %v195 = vand.u32 2147483647, %v194
    %v197 = vcvt.s32.f32 %v190
    %v198 = vmul.f32 %v197, %v195
    %v199 = vxor.u32 %v198, 2147483648
    %v200 = vsel %vm117, %v199, %v198
    %v201 = vsub.s32 4, %v177
    %v202 = vsel %vm117, %v201, %v177
    %v203 = vsel %vm116, %v112, %v200
    %v204 = vsel %vm116, 0, %v202
    %v205 = vcosq.f32.pop %v203
    %v206 = vsinq.f32.pop %v203
    %vm207 = vweird.f32 %v112
    %v208 = vadd.s32 %v204, 3
    %v209 = vand.u32 %v208, 3
    %vm210 = vcmp.lt.s32.totalorder %v209, 2
    %vm211 = vcmp.eq.s32.totalorder %v209, 0
    %v212 = vxor.u32 %v206, 2147483648
    %v213 = vsel %vm211, %v205, %v212
    %vm214 = vcmp.eq.s32.totalorder %v209, 2
    %v215 = vxor.u32 %v205, 2147483648
    %v216 = vsel %vm214, %v215, %v206
    %v217 = vsel %vm210, %v213, %v216
    %v218 = vsel %vm207, nan, %v217
    %219 = vst [vmem:[#allocation7] sm:$0xff] %v218
    // Predicated region
    $region18: #{tpu_custom_call.1} parent=1 // pred_check
      _
    $region19: #{tpu_custom_call.1} parent=1 // pred_check_branch
      %221 = sbr.rel (0) target = $region21
    $region20: #{tpu_custom_call.1} parent=1 // pred_region
      %s223 = ssub.s32 128, 128
      %224 = vsyncadd [#allocation4], %s223
      %s226 = sshll.u32 [#allocation7], 4
      %s227 = int_to_ptr.vmem [resolvable:$true] %s226
      %229 = dma.vmem_to_hbm [thread:$0]  %s227, 128, %s2, [#allocation4]
    $region21: #{tpu_custom_call.1} parent=1 // pred_fallthru
      _
    // Predicated region
    $region22: #{tpu_custom_call.1} parent=1 // pred_check
      _
    $region23: #{tpu_custom_call.1} parent=1 // pred_check_branch
      %231 = sbr.rel (0) target = $region25
    $region24: #{tpu_custom_call.1} parent=1 // pred_region
      %232 = dma.done [#allocation4], 128
    $region25: #{tpu_custom_call.1} parent=1 // pred_fallthru
      _
    %233 = vsyncpa [#allocation3], 1
    %234 = vsyncpa [#allocation6], 1
    %235 = vsyncpa [#allocation4], 1

</llo_original>
